<compile_context>
chip_gen: v7x
topology: tpu7x:2x2x1
jax: 0.10.0
libtpu: 0.0.40
codegen_flags: <defaults>
</compile_context>

<pallas_src>
import jax
import jax.numpy as jnp
import numpy as np
from jax.experimental import pallas as pl
from jax.experimental.pallas import tpu as pltpu

HIDDEN = 16
OUT_DIM = 2
GATE_COLS = 6 * HIDDEN  # [i_f, i_r, o_f, o_r, g_f, g_r] -> 96 columns


def bilstm_kernel(x_ref, wg_ref, bg_ref, wo_ref, bo_ref, out_ref):
    # Cast the streamed f32 tile to bf16 in-kernel (VPU slack): single bf16 MXU
    # pass with f32 accumulation, no wrapper-side astype pass over x in HBM.
    x = x_ref[...].astype(jnp.bfloat16)                       # (Bblk, D)

    # Single fused gate matmul for both directions, f-gate already dropped.
    g = jnp.dot(x, wg_ref[...], preferred_element_type=jnp.float32) + bg_ref[...]

    sig = jax.nn.sigmoid(g[:, :4 * HIDDEN])                   # 64-lane slab: i_f,i_r,o_f,o_r
    tnh = jnp.tanh(g[:, 4 * HIDDEN:GATE_COLS])                # 32-lane slab: g_f,g_r

    i_cat = sig[:, :2 * HIDDEN]                               # (Bblk, 32) = [i_f | i_r]
    o_cat = sig[:, 2 * HIDDEN:4 * HIDDEN]                     # (Bblk, 32) = [o_f | o_r]
    h_cat = o_cat * jnp.tanh(i_cat * tnh)                     # (Bblk, 32) = [h_f | h_r]

    # Fused Linear(32, 2) kept OFF the MXU: broadcast-multiply (VPU) + 32-lane
    # reduce (XLU) per output unit.  Avoids a second vmatmul push per 8 rows.
    w0 = wo_ref[0:1, :]                                       # (1, 32)
    w1 = wo_ref[1:2, :]                                       # (1, 32)
    out0 = jnp.sum(h_cat * w0, axis=-1, keepdims=True)        # (Bblk, 1)
    out1 = jnp.sum(h_cat * w1, axis=-1, keepdims=True)        # (Bblk, 1)
    out = jnp.concatenate([out0, out1], axis=-1) + bo_ref[...]
    out_ref[...] = out.astype(out_ref.dtype)


def _pick_block_b(B, D):
    """Batch tile: 16-aligned, near-equal blocks, even block count when it
    matters (v7x 2-TC balance), sized so the double-buffered f32 x tile stays
    well under v5e's 16 MiB default scoped VMEM limit."""
    x_buf_budget = 4 * 1024 * 1024                 # bytes for ONE x buffer (x2 when double-buffered)
    bb_max = x_buf_budget // max(1, D * 4)         # x streams as f32 (4 B/elem), cast in-kernel
    bb_max = int(max(16, min(bb_max, 4096)))       # allow large tiles at small D (amortize step overhead)
    if B <= bb_max:
        # Split into 2 near-equal "parallel" blocks when large enough so both
        # v7x TensorCores get work; tiny batches stay as one block.
        n_blocks = 2 if B >= 32 else 1
    else:
        # Even number of near-equal blocks respecting the VMEM cap.
        n_blocks = 2 * pl.cdiv(B, 2 * bb_max)
    bb = pl.cdiv(B, n_blocks)
    bb = max(16, ((bb + 15) // 16) * 16)           # 16-aligned: bf16 packs (16,128)/vreg
    return int(bb)


def _prep_params(params):
    """Fuse fwd/rev gate weights, drop the dead f-gate, pre-transpose for (B,D)@(D,96)."""
    H = HIDDEN

    def gate_parts(w_ih, b_ih, b_hh):
        wt = jnp.asarray(w_ih).T.astype(jnp.float32)          # (D, 4H), cols [i|f|g|o]
        b = (jnp.asarray(b_ih) + jnp.asarray(b_hh)).astype(jnp.float32)
        i_w, g_w, o_w = wt[:, 0:H], wt[:, 2 * H:3 * H], wt[:, 3 * H:4 * H]
        i_b, g_b, o_b = b[0:H], b[2 * H:3 * H], b[3 * H:4 * H]
        return (i_w, o_w, g_w), (i_b, o_b, g_b)

    (i_wf, o_wf, g_wf), (i_bf, o_bf, g_bf) = gate_parts(
        params["w_ih_f"], params["b_ih_f"], params["b_hh_f"])
    (i_wr, o_wr, g_wr), (i_br, o_br, g_br) = gate_parts(
        params["w_ih_r"], params["b_ih_r"], params["b_hh_r"])

    # Column order: [i_f, i_r, o_f, o_r | g_f, g_r]  (sigmoid slab | tanh slab).
    wg = jnp.concatenate([i_wf, i_wr, o_wf, o_wr, g_wf, g_wr], axis=1)   # (D, 96)
    bg = jnp.concatenate([i_bf, i_br, o_bf, o_br, g_bf, g_br])[None, :]  # (1, 96) f32

    wo = jnp.asarray(params["w_out"]).astype(jnp.float32)                # (2, 32); row j = output unit j
    bo = jnp.asarray(params["b_out"]).astype(jnp.float32)[None, :]       # (1, 2)
    return wg.astype(jnp.bfloat16), bg, wo, bo


def bilstm_net(x, params, block_b=None):
    B = x.shape[0]
    x2 = x.reshape(B, -1)                                     # x.view(len(x), 1, -1), seq == 1 (no copy)
    D = x2.shape[1]

    bb = _pick_block_b(B, D) if block_b is None else block_b
    n_blocks = pl.cdiv(B, bb)                                 # ragged tail handled by Pallas masking

    wg, bg, wo, bo = _prep_params(params)

    out = pl.pallas_call(
        bilstm_kernel,
        out_shape=jax.ShapeDtypeStruct((B, OUT_DIM), jnp.float32),
        grid=(n_blocks,),
        in_specs=[
            pl.BlockSpec((bb, D), lambda i: (i, 0)),                 # streaming x tile (f32, cast in-kernel)
            pl.BlockSpec((D, GATE_COLS), lambda i: (0, 0)),          # fused bf16 gate weights (grid-invariant)
            pl.BlockSpec((1, GATE_COLS), lambda i: (0, 0)),          # fused gate bias (f32)
            pl.BlockSpec((OUT_DIM, 2 * HIDDEN), lambda i: (0, 0)),   # Linear weight rows (f32, used off-MXU)
            pl.BlockSpec((1, OUT_DIM), lambda i: (0, 0)),            # Linear bias
        ],
        out_specs=pl.BlockSpec((bb, OUT_DIM), lambda i: (i, 0)),
        compiler_params=pltpu.CompilerParams(dimension_semantics=("parallel",)),
    )(x2, wg, bg, wo, bo)
    return out


def init_params(key, input_size):
    # Deterministic init, uniform(-1/sqrt(H), 1/sqrt(H)) like PyTorch's default.
    k = 1.0 / np.sqrt(HIDDEN)
    keys = jax.random.split(key, 10)
    u = lambda kk, shape: jax.random.uniform(kk, shape, jnp.float32, -k, k)
    return {
        "w_ih_f": u(keys[0], (4 * HIDDEN, input_size)),
        "w_hh_f": u(keys[1], (4 * HIDDEN, HIDDEN)),      # unused: h0 == 0, seq == 1
        "b_ih_f": u(keys[2], (4 * HIDDEN,)),
        "b_hh_f": u(keys[3], (4 * HIDDEN,)),
        "w_ih_r": u(keys[4], (4 * HIDDEN, input_size)),
        "w_hh_r": u(keys[5], (4 * HIDDEN, HIDDEN)),      # unused: h0 == 0, seq == 1
        "b_ih_r": u(keys[6], (4 * HIDDEN,)),
        "b_hh_r": u(keys[7], (4 * HIDDEN,)),
        "w_out": u(keys[8], (OUT_DIM, 2 * HIDDEN)),
        "b_out": u(keys[9], (OUT_DIM,)),
    }


def reference(x, p):
    # Pure-JAX f32 reference of the PyTorch forward (seq_len == 1, zero init state).
    B = x.shape[0]
    x2 = x.reshape(B, -1).astype(jnp.float32)

    def cell(w_ih, b_ih, b_hh):
        g = x2 @ w_ih.T + b_ih + b_hh
        i, f, gg, o = jnp.split(g, 4, axis=-1)
        c = jax.nn.sigmoid(i) * jnp.tanh(gg)
        return jax.nn.sigmoid(o) * jnp.tanh(c)

    h_f = cell(p["w_ih_f"], p["b_ih_f"], p["b_hh_f"])
    h_r = cell(p["w_ih_r"], p["b_ih_r"], p["b_hh_r"])
    r_out_last = jnp.concatenate([h_f, h_r], axis=-1)    # r_out[:, -1]
    return r_out_last @ p["w_out"].T + p["b_out"]


if __name__ == "__main__":
    key = jax.random.PRNGKey(0)
    k_x, k_p = jax.random.split(key)

    # Small NCHW-style input: (N=64, C=4, H=4, W=4) -> input_size = 64.
    # N=64 gives a 2-step "parallel" grid (block_b=32), exercising the pipeline
    # and the balanced 2-block split.
    x = jax.random.normal(k_x, (64, 4, 4, 4), dtype=jnp.float32)
    params = init_params(k_p, input_size=4 * 4 * 4)

    out = bilstm_net(x, params)
    out = jax.block_until_ready(out)

    ref = reference(x, params)
    # bf16 gate matmul (f32 accumulation) => slightly loosened tolerance.
    np.testing.assert_allclose(np.asarray(out), np.asarray(ref), rtol=3e-2, atol=3e-2)

    print("KERNEL_OK")
</pallas_src>

<mosaic_0001>
module attributes {stable_mosaic.version = 11 : i64} {
  func.func @bilstm_kernel(%arg0: i32, %arg1: memref<32x64xf32, #tpu.memory_space<vmem>>, %arg2: memref<64x96xbf16, #tpu.memory_space<vmem>>, %arg3: memref<1x96xf32, #tpu.memory_space<vmem>>, %arg4: memref<2x32xf32, #tpu.memory_space<vmem>>, %arg5: memref<1x2xf32, #tpu.memory_space<vmem>>, %arg6: memref<32x2xf32, #tpu.memory_space<vmem>>) attributes {dimension_semantics = [#tpu.dimension_semantics<parallel>], iteration_bounds = array<i64: 2>, scalar_prefetch = 0 : i64, scratch_operands = 0 : i64, tpu.core_type = #tpu.core_type<tc>, window_params = [{transform_indices = @transform_0, window_bounds = array<i64: 32, 64>}, {pipeline_mode = #tpu.pipeline_mode<synchronous>, transform_indices = @transform_1, window_bounds = array<i64: 64, 96>}, {pipeline_mode = #tpu.pipeline_mode<synchronous>, transform_indices = @transform_2, window_bounds = array<i64: 1, 96>}, {pipeline_mode = #tpu.pipeline_mode<synchronous>, transform_indices = @transform_3, window_bounds = array<i64: 2, 32>}, {pipeline_mode = #tpu.pipeline_mode<synchronous>, transform_indices = @transform_4, window_bounds = array<i64: 1, 2>}, {transform_indices = @transform_5, window_bounds = array<i64: 32, 2>}]} {
    %c0 = arith.constant 0 : index
    %c0_0 = arith.constant 0 : index
    %0 = vector.load %arg1[%c0, %c0_0] : memref<32x64xf32, #tpu.memory_space<vmem>>, vector<32x64xf32>
    %1 = arith.truncf %0 : vector<32x64xf32> to vector<32x64xbf16>
    %c0_1 = arith.constant 0 : index
    %c0_2 = arith.constant 0 : index
    %2 = vector.load %arg2[%c0_1, %c0_2] : memref<64x96xbf16, #tpu.memory_space<vmem>>, vector<64x96xbf16>
    %cst = arith.constant dense<0.000000e+00> : vector<32x96xf32>
    %3 = tpu.matmul %1, %2, %cst {dimension_numbers = #tpu.dot_dimension_numbers<[1], [0], [0], [1], [0, 0, 1, 1], [], []>} : vector<32x64xbf16>, vector<64x96xbf16>, vector<32x96xf32> -> vector<32x96xf32>
    %c0_3 = arith.constant 0 : index
    %c0_4 = arith.constant 0 : index
    %4 = vector.load %arg3[%c0_3, %c0_4] : memref<1x96xf32, #tpu.memory_space<vmem>>, vector<1x96xf32>
    %5 = vector.broadcast %4 : vector<1x96xf32> to vector<32x96xf32>
    %6 = arith.addf %3, %5 : vector<32x96xf32>
    %7 = vector.extract_strided_slice %6 {offsets = [0, 0], sizes = [32, 64], strides = [1, 1]} : vector<32x96xf32> to vector<32x64xf32>
    %8 = arith.negf %7 : vector<32x64xf32>
    %9 = math.exp %8 : vector<32x64xf32>
    %cst_5 = arith.constant 1.000000e+00 : f32
    %10 = vector.broadcast %cst_5 : f32 to vector<32x64xf32>
    %11 = arith.addf %10, %9 : vector<32x64xf32>
    %12 = arith.divf %10, %11 : vector<32x64xf32>
    %13 = vector.extract_strided_slice %6 {offsets = [0, 64], sizes = [32, 32], strides = [1, 1]} : vector<32x96xf32> to vector<32x32xf32>
    %14 = math.tanh %13 : vector<32x32xf32>
    %15 = vector.extract_strided_slice %12 {offsets = [0, 0], sizes = [32, 32], strides = [1, 1]} : vector<32x64xf32> to vector<32x32xf32>
    %16 = vector.extract_strided_slice %12 {offsets = [0, 32], sizes = [32, 32], strides = [1, 1]} : vector<32x64xf32> to vector<32x32xf32>
    %17 = arith.mulf %15, %14 : vector<32x32xf32>
    %18 = math.tanh %17 : vector<32x32xf32>
    %19 = arith.mulf %16, %18 : vector<32x32xf32>
    %c0_6 = arith.constant 0 : index
    %c0_7 = arith.constant 0 : index
    %20 = vector.load %arg4[%c0_6, %c0_7] : memref<2x32xf32, #tpu.memory_space<vmem>>, vector<1x32xf32>
    %c1 = arith.constant 1 : index
    %c0_8 = arith.constant 0 : index
    %21 = vector.load %arg4[%c1, %c0_8] : memref<2x32xf32, #tpu.memory_space<vmem>>, vector<1x32xf32>
    %22 = vector.broadcast %20 : vector<1x32xf32> to vector<32x32xf32>
    %23 = arith.mulf %19, %22 : vector<32x32xf32>
    %cst_9 = arith.constant dense<0.000000e+00> : vector<32xf32>
    %24 = vector.multi_reduction <add>, %23, %cst_9 [1] : vector<32x32xf32> to vector<32xf32>
    %25 = vector.shape_cast %24 : vector<32xf32> to vector<32x1xf32>
    %26 = vector.broadcast %21 : vector<1x32xf32> to vector<32x32xf32>
    %27 = arith.mulf %19, %26 : vector<32x32xf32>
    %cst_10 = arith.constant dense<0.000000e+00> : vector<32xf32>
    %28 = vector.multi_reduction <add>, %27, %cst_10 [1] : vector<32x32xf32> to vector<32xf32>
    %29 = vector.shape_cast %28 : vector<32xf32> to vector<32x1xf32>
    %30 = tpu.concatenate %25, %29 in 1 : vector<32x1xf32>, vector<32x1xf32> -> vector<32x2xf32>
    %c0_11 = arith.constant 0 : index
    %c0_12 = arith.constant 0 : index
    %31 = vector.load %arg5[%c0_11, %c0_12] : memref<1x2xf32, #tpu.memory_space<vmem>>, vector<1x2xf32>
    %32 = vector.broadcast %31 : vector<1x2xf32> to vector<32x2xf32>
    %33 = arith.addf %30, %32 : vector<32x2xf32>
    %c0_13 = arith.constant 0 : index
    %c0_14 = arith.constant 0 : index
    %34 = vector.load %arg6[%c0_13, %c0_14] : memref<32x2xf32, #tpu.memory_space<vmem>>, vector<32x2xf32>
    tpu.vector_store %arg6[%c0_13, %c0_14], %33 {strides = array<i32>} : memref<32x2xf32, #tpu.memory_space<vmem>>, vector<32x2xf32>,
    return
  }
  func.func @transform_0(%arg0: i32) -> (i32, i32) {
    %c0_i32 = arith.constant 0 : i32
    %c0_i32_0 = arith.constant 0 : i32
    return %arg0, %c0_i32 : i32, i32
  }
  func.func @transform_1(%arg0: i32) -> (i32, i32) {
    %c0_i32 = arith.constant 0 : i32
    %c0_i32_0 = arith.constant 0 : i32
    %c0_i32_1 = arith.constant 0 : i32
    return %c0_i32, %c0_i32_0 : i32, i32
  }
  func.func @transform_2(%arg0: i32) -> (i32, i32) {
    %c0_i32 = arith.constant 0 : i32
    %c0_i32_0 = arith.constant 0 : i32
    %c0_i32_1 = arith.constant 0 : i32
    return %c0_i32, %c0_i32_0 : i32, i32
  }
  func.func @transform_3(%arg0: i32) -> (i32, i32) {
    %c0_i32 = arith.constant 0 : i32
    %c0_i32_0 = arith.constant 0 : i32
    %c0_i32_1 = arith.constant 0 : i32
    return %c0_i32, %c0_i32_0 : i32, i32
  }
  func.func @transform_4(%arg0: i32) -> (i32, i32) {
    %c0_i32 = arith.constant 0 : i32
    %c0_i32_0 = arith.constant 0 : i32
    %c0_i32_1 = arith.constant 0 : i32
    return %c0_i32, %c0_i32_0 : i32, i32
  }
  func.func @transform_5(%arg0: i32) -> (i32, i32) {
    %c0_i32 = arith.constant 0 : i32
    %c0_i32_0 = arith.constant 0 : i32
    return %arg0, %c0_i32 : i32, i32
  }
}

</mosaic_0001>

<llo_original>
// kernel: tpu_custom_call.1
$region0: #{tpu_custom_call.1}
  #allocation0 [shape = 'u32[]', space=smem, size = 0x4, offset = 0x4, fixed_abs, tag = 'smem constant byte address 0x4 - core index']
  #allocation1 [shape = 'u32[144,128]{1,0:T(1,128)}', space=vmem, size = 0x12000, scoped, tag = 'internal scratch']
  %s0 = inlined_call_operand.hbm [shape: f32[64,64], index: 0, kind: input, shape index: {}]
  %s1 = inlined_call_operand.hbm [shape: bf16[64,96], index: 1, kind: input, shape index: {}]
  %s2 = inlined_call_operand.vmem [shape: f32[1,96], index: 2, kind: input, shape index: {}]
  %s3 = inlined_call_operand.vmem [shape: f32[2,32], index: 3, kind: input, shape index: {}]
  %s4 = inlined_call_operand.vmem [shape: f32[1,2], index: 4, kind: input, shape index: {}]
  %s5 = inlined_call_operand.vmem [shape: f32[64,2], index: 5, kind: output, shape index: {}]
  %s6 = sld [smem:[#allocation0]]
  $region61: #{tpu_custom_call.1} parent=0
    _
  %s8 = ssub.s32 1, %s6
  %s9 = scalar_select 0, %s8, %s6
  $region1: #{tpu_custom_call.1} parent=0
    #allocation2 [shape = 'u8[32768]{0}', space=vmem, size = 0x8000, scoped, tag = 'input window, operand 0']
    #allocation3 [shape = 's32[2]{0}', space=sflag, size = 0x8, scoped, tag = 'scoped memory for tpu_custom_call.1']
    #allocation4 [shape = 'u8[16384]{0}', space=vmem, size = 0x4000, scoped, tag = 'input window, operand 1, single buffered']
    #allocation5 [shape = 's32[1]{0}', space=sflag, size = 0x4, scoped, tag = 'scoped memory for tpu_custom_call.1']
    %10 = vsyncpa [#allocation3], 0
    %s11 = scalar_lea.sflag [#allocation3], 1
    %12 = vsyncpa %s11, 0
    %13 = vsyncpa [#allocation5], 0
    loop: start=0, step=1, limit=4
    $region2: #{tpu_custom_call.1} parent=1 // loop_pre_header
      _
    $region3: #{tpu_custom_call.1} parent=1 // loop_header
      %s15 = sphi 0, %s19
      %p16 = scmp.ge.s32.totalorder %s15, 4
      %s25 = sphi 0, %s27
      %s28 = sphi 0, %s25
      %s29 = sphi 0, %s28
      %s45 = sphi 0, %s29
      %s49 = sphi 0, %s49
      %s51 = sphi 0, %s49
      %s52 = sphi 0, %s51
      %s66 = sphi 0, %s52
      %s70 = sphi 0, %s70
      %s72 = sphi 0, %s70
      %s73 = sphi 0, %s72
      %s87 = sphi 0, %s73
      %s91 = sphi 0, %s91
      %s93 = sphi 0, %s91
      %s94 = sphi 0, %s93
      %s108 = sphi 0, %s94
      %s112 = sphi 0, %s112
      %s114 = sphi 0, %s112
      %s115 = sphi 0, %s114
      %s129 = sphi 0, %s115
      %s135 = sphi 0, %s137
      %s138 = sphi 0, %s135
      %s139 = sphi 0, %s138
      %s155 = sphi 0, %s139
    $region4: #{tpu_custom_call.1} parent=1 // loop_header_branch
      %18 = sbr.rel (%p16) target = $region8
    $region5: #{tpu_custom_call.1} parent=1 // loop_body
      %s20 = ssub.s32 %s15, 1
      %s21 = ssub.s32 %s15, 2
      %s22 = sadd.s32 %s15, 1
      %s23 = ssub.s32 %s15, %s22
      %p24 = scmp.eq.s32.totalorder %s23, 0
      %s26 = sadd.s32 %s25, 1
      %s27 = scalar_select %p24, %s25, %s26
      %p30 = pneg %p24
      %p31 = scmp.eq.s32.totalorder %s15, 1
      %p32 = por %p30, %p31
      %p33 = scmp.ne.s32.totalorder %s25, %s28
      %p34 = scmp.eq.s32.totalorder %s15, 0
      %p35 = por %p33, %p34
      %p36 = scmp.ne.s32.totalorder %s25, %s28
      %p37 = scmp.eq.s32.totalorder %s20, 1
      %p38 = por %p36, %p37
      %p39 = scmp.ne.s32.totalorder %s28, %s29
      %p40 = scmp.eq.s32.totalorder %s20, 0
      %p41 = por %p39, %p40
      %p42 = scmp.ne.s32.totalorder %s28, %s29
      %p43 = scmp.eq.s32.totalorder %s21, 1
      %p44 = por %p42, %p43
      %p46 = scmp.ne.s32.totalorder %s29, %s45
      %p47 = scmp.eq.s32.totalorder %s21, 0
      %p48 = por %p46, %p47
      %s50 = sadd.s32 %s49, 1
      %p53 = scmp.eq.s32.totalorder %s15, 1
      %p54 = scmp.ne.s32.totalorder %s49, %s51
      %p55 = scmp.eq.s32.totalorder %s15, 0
      %p56 = por %p54, %p55
      %p57 = scmp.ne.s32.totalorder %s49, %s51
      %p58 = scmp.eq.s32.totalorder %s20, 1
      %p59 = por %p57, %p58
      %p60 = scmp.ne.s32.totalorder %s51, %s52
      %p61 = scmp.eq.s32.totalorder %s20, 0
      %p62 = por %p60, %p61
      %p63 = scmp.ne.s32.totalorder %s51, %s52
      %p64 = scmp.eq.s32.totalorder %s21, 1
      %p65 = por %p63, %p64
      %p67 = scmp.ne.s32.totalorder %s52, %s66
      %p68 = scmp.eq.s32.totalorder %s21, 0
      %p69 = por %p67, %p68
      %s71 = sadd.s32 %s70, 1
      %p74 = scmp.eq.s32.totalorder %s15, 1
      %p75 = scmp.ne.s32.totalorder %s70, %s72
      %p76 = scmp.eq.s32.totalorder %s15, 0
      %p77 = por %p75, %p76
      %p78 = scmp.ne.s32.totalorder %s70, %s72
      %p79 = scmp.eq.s32.totalorder %s20, 1
      %p80 = por %p78, %p79
      %p81 = scmp.ne.s32.totalorder %s72, %s73
      %p82 = scmp.eq.s32.totalorder %s20, 0
      %p83 = por %p81, %p82
      %p84 = scmp.ne.s32.totalorder %s72, %s73
      %p85 = scmp.eq.s32.totalorder %s21, 1
      %p86 = por %p84, %p85
      %p88 = scmp.ne.s32.totalorder %s73, %s87
      %p89 = scmp.eq.s32.totalorder %s21, 0
      %p90 = por %p88, %p89
      %s92 = sadd.s32 %s91, 1
      %p95 = scmp.eq.s32.totalorder %s15, 1
      %p96 = scmp.ne.s32.totalorder %s91, %s93
      %p97 = scmp.eq.s32.totalorder %s15, 0
      %p98 = por %p96, %p97
      %p99 = scmp.ne.s32.totalorder %s91, %s93
      %p100 = scmp.eq.s32.totalorder %s20, 1
      %p101 = por %p99, %p100
      %p102 = scmp.ne.s32.totalorder %s93, %s94
      %p103 = scmp.eq.s32.totalorder %s20, 0
      %p104 = por %p102, %p103
      %p105 = scmp.ne.s32.totalorder %s93, %s94
      %p106 = scmp.eq.s32.totalorder %s21, 1
      %p107 = por %p105, %p106
      %p109 = scmp.ne.s32.totalorder %s94, %s108
      %p110 = scmp.eq.s32.totalorder %s21, 0
      %p111 = por %p109, %p110
      %s113 = sadd.s32 %s112, 1
      %p116 = scmp.eq.s32.totalorder %s15, 1
      %p117 = scmp.ne.s32.totalorder %s112, %s114
      %p118 = scmp.eq.s32.totalorder %s15, 0
      %p119 = por %p117, %p118
      %p120 = scmp.ne.s32.totalorder %s112, %s114
      %p121 = scmp.eq.s32.totalorder %s20, 1
      %p122 = por %p120, %p121
      %p123 = scmp.ne.s32.totalorder %s114, %s115
      %p124 = scmp.eq.s32.totalorder %s20, 0
      %p125 = por %p123, %p124
      %p126 = scmp.ne.s32.totalorder %s114, %s115
      %p127 = scmp.eq.s32.totalorder %s21, 1
      %p128 = por %p126, %p127
      %p130 = scmp.ne.s32.totalorder %s115, %s129
      %p131 = scmp.eq.s32.totalorder %s21, 0
      %p132 = por %p130, %p131
      %s133 = ssub.s32 %s15, %s22
      %p134 = scmp.eq.s32.totalorder %s133, 0
      %s136 = sadd.s32 %s135, 1
      %s137 = scalar_select %p134, %s135, %s136
      %p140 = pneg %p134
      %p141 = scmp.eq.s32.totalorder %s15, 1
      %p142 = por %p140, %p141
      %p143 = scmp.ne.s32.totalorder %s135, %s138
      %p144 = scmp.eq.s32.totalorder %s15, 0
      %p145 = por %p143, %p144
      %p146 = scmp.ne.s32.totalorder %s135, %s138
      %p147 = scmp.eq.s32.totalorder %s20, 1
      %p148 = por %p146, %p147
      %p149 = scmp.ne.s32.totalorder %s138, %s139
      %p150 = scmp.eq.s32.totalorder %s20, 0
      %p151 = por %p149, %p150
      %p152 = scmp.ne.s32.totalorder %s138, %s139
      %p153 = scmp.eq.s32.totalorder %s21, 1
      %p154 = por %p152, %p153
      %p156 = scmp.ne.s32.totalorder %s139, %s155
      %p157 = scmp.eq.s32.totalorder %s21, 0
      %p158 = por %p156, %p157
      %p159 = scmp.le.s32.totalorder 1, %s15
      %p160 = scmp.lt.s32.totalorder %s15, 3
      %p161 = pnand %p159, %p160
      %p162 = pneg %p161
      // Predicated region
      $region9: #{tpu_custom_call.1} parent=5 // pred_check
        _
      $region10: #{tpu_custom_call.1} parent=5 // pred_check_branch
        %164 = sbr.rel (%p161) target = $region12
      $region11: #{tpu_custom_call.1} parent=5 // pred_region
        %s165 = ssub.s32 %s15, 1
        // Predicated region
        $region13: #{tpu_custom_call.1} parent=11 // pred_check
          %p166 = pneg %p62
        $region14: #{tpu_custom_call.1} parent=11 // pred_check_branch
          %168 = sbr.rel (%p166) target = $region16
        $region15: #{tpu_custom_call.1} parent=11 // pred_region
          %s170 = ssub.s32 512, 512
          %171 = vsyncadd [#allocation5], %s170
          %s172 = sshll.u32 [#allocation4], 4
          %s173 = int_to_ptr.vmem [resolvable:$true] %s172
          %178 = dma.hbm_to_vmem [thread:$0]  %s1, 512, %s173, [#allocation5], 64, 64, 4
        $region16: #{tpu_custom_call.1} parent=11 // pred_fallthru
          _
        // Predicated region
        $region17: #{tpu_custom_call.1} parent=11 // pred_check
          %p179 = pneg %p83
        $region18: #{tpu_custom_call.1} parent=11 // pred_check_branch
          %181 = sbr.rel (%p179) target = $region20
        $region19: #{tpu_custom_call.1} parent=11 // pred_region
          _
        $region20: #{tpu_custom_call.1} parent=11 // pred_fallthru
          _
        // Predicated region
        $region21: #{tpu_custom_call.1} parent=11 // pred_check
          %p182 = pneg %p104
        $region22: #{tpu_custom_call.1} parent=11 // pred_check_branch
          %184 = sbr.rel (%p182) target = $region24
        $region23: #{tpu_custom_call.1} parent=11 // pred_region
          _
        $region24: #{tpu_custom_call.1} parent=11 // pred_fallthru
          _
        // Predicated region
        $region25: #{tpu_custom_call.1} parent=11 // pred_check
          %p185 = pneg %p125
        $region26: #{tpu_custom_call.1} parent=11 // pred_check_branch
          %187 = sbr.rel (%p185) target = $region28
        $region27: #{tpu_custom_call.1} parent=11 // pred_region
          _
        $region28: #{tpu_custom_call.1} parent=11 // pred_fallthru
          _
      $region12: #{tpu_custom_call.1} parent=5 // pred_fallthru
        _
      %p188 = scmp.lt.s32.totalorder %s15, 2
      // Predicated region
      $region29: #{tpu_custom_call.1} parent=5 // pred_check
        %p189 = pneg %p188
      $region30: #{tpu_custom_call.1} parent=5 // pred_check_branch
        %191 = sbr.rel (%p189) target = $region32
      $region31: #{tpu_custom_call.1} parent=5 // pred_region
        // Predicated region
        $region33: #{tpu_custom_call.1} parent=31 // pred_check
          %p192 = pneg %p35
        $region34: #{tpu_custom_call.1} parent=31 // pred_check_branch
          %194 = sbr.rel (%p192) target = $region36
        $region35: #{tpu_custom_call.1} parent=31 // pred_region
          %s195 = sand.u32 %s25, 1
          %s196 = scalar_lea.sflag [#allocation3], %s195
          %s197 = sand.u32 %s25, 1
          %s198 = smul.addr %s197, 32
          %s199 = scalar_lea.vmem [#allocation2], %s198
          %s200 = smul.u32 4, %s15
          %s202 = ssub.s32 512, 512
          %203 = vsyncadd %s196, %s202
          %s204 = smul.addr %s200, 128
          %s205 = scalar_lea.hbm %s0, %s204
          %s206 = sshll.u32 %s199, 4
          %s207 = int_to_ptr.vmem [resolvable:$true] %s206
          %212 = dma.hbm_to_vmem [thread:$0]  %s205, 512, %s207, %s196, 128, 128, 8
        $region36: #{tpu_custom_call.1} parent=31 // pred_fallthru
          _
      $region32: #{tpu_custom_call.1} parent=5 // pred_fallthru
        _
      %p213 = scmp.le.s32.totalorder 1, %s15
      %p214 = scmp.lt.s32.totalorder %s15, 3
      %p215 = pnand %p213, %p214
      %p216 = pneg %p215
      // Predicated region
      $region37: #{tpu_custom_call.1} parent=5 // pred_check
        _
      $region38: #{tpu_custom_call.1} parent=5 // pred_check_branch
        %218 = sbr.rel (%p215) target = $region40
      $region39: #{tpu_custom_call.1} parent=5 // pred_region
        %s219 = ssub.s32 %s15, 1
        %s220 = sand.u32 %s28, 1
        %s221 = scalar_lea.sflag [#allocation3], %s220
        %s222 = sand.u32 %s28, 1
        %s223 = smul.addr %s222, 32
        %s224 = scalar_lea.vmem [#allocation2], %s223
        // Predicated region
        $region41: #{tpu_custom_call.1} parent=39 // pred_check
          %p225 = pneg %p41
        $region42: #{tpu_custom_call.1} parent=39 // pred_check_branch
          %227 = sbr.rel (%p225) target = $region44
        $region43: #{tpu_custom_call.1} parent=39 // pred_region
          %228 = dma.done %s221, 512
        $region44: #{tpu_custom_call.1} parent=39 // pred_fallthru
          _
        // Predicated region
        $region45: #{tpu_custom_call.1} parent=39 // pred_check
          %p229 = pneg %p62
        $region46: #{tpu_custom_call.1} parent=39 // pred_check_branch
          %231 = sbr.rel (%p229) target = $region48
        $region47: #{tpu_custom_call.1} parent=39 // pred_region
          %232 = dma.done [#allocation5], 512
        $region48: #{tpu_custom_call.1} parent=39 // pred_fallthru
          _
        %s233 = sand.u32 %s28, 1
        %s234 = scalar_lea.sflag [#allocation3], %s233
        %s235 = sand.u32 %s28, 1
        %s236 = smul.addr %s235, 32
        %s237 = scalar_lea.vmem [#allocation2], %s236
        %p238 = pneg %p41
        %p239 = pneg %p38
        %p240 = pneg %p62
        %p241 = pneg %p59
        %p242 = pneg %p83
        %p243 = pneg %p80
        %p244 = pneg %p104
        %p245 = pneg %p101
        %p246 = pneg %p125
        %p247 = pneg %p122
        %p248 = pneg %p151
        %p249 = pneg %p148
        %s250 = smul.u32 4, %s20
        %p251 = scmp.lt.s32.totalorder %s250, 7
        %s252 = scalar_select %p251, %s250, 7
        %s253 = smul.addr %s252, 8
        %s254 = scalar_lea.vmem %s5, %s253
        %s255 = smul.u32 4, %s20
        %s256 = smul.u32 4, %s20
        %p257 = scmp.lt.s32.totalorder %s256, 7
        %s258 = scalar_select %p257, %s256, 7
        %s259 = smul.addr %s258, 8
        %s260 = scalar_lea.vmem %s5, %s259
        %s261 = smul.u32 4, %s20
        %v263 = vld [vmem:[%s224] sm:$0xff]
        %v264 = vld [vmem:[%s224 + $0x8] sm:$0xff]
        %v265 = vld [vmem:[%s224 + $0x10] sm:$0xff]
        %v266 = vld [vmem:[%s224 + $0x18] sm:$0xff]
        %v267 = vpack.c.bf16 %v264, %v263
        %v268 = vpack.c.bf16 %v266, %v265
        %v269 = vld [vmem:[#allocation4] sm:$0xf]
        %v270 = vld [vmem:[#allocation4 + $0x4] sm:$0xf]
        %v271 = vld [vmem:[#allocation4 + $0x8] sm:$0xf]
        %v272 = vld [vmem:[#allocation4 + $0xc] sm:$0xf]
        %v273 = vld [vmem:[#allocation4 + $0x10] sm:$0xf]
        %v274 = vld [vmem:[#allocation4 + $0x14] sm:$0xf]
        %v275 = vld [vmem:[#allocation4 + $0x18] sm:$0xf]
        %v276 = vld [vmem:[#allocation4 + $0x1c] sm:$0xf]
        %v277 = vld [vmem:[%s2] sm:$0x1]
        %v279 = vlaneseq
        %v280 = vshrl.u32 %v279, 7
        %v281 = vsub.s32 0, %v280
        %v282 = vrot.slane %v277, %v281
        %v292 = vunpack.c.l.b16 %v269
        %v293 = vunpack.c.l.b16 %v270
        %v294 = vunpack.c.l.b16 %v271
        %v295 = vunpack.c.l.b16 %v272
        %v296 = vunpack.c.l.b16 %v273
        %v297 = vunpack.c.l.b16 %v274
        %v298 = vunpack.c.l.b16 %v275
        %v299 = vunpack.c.l.b16 %v276
        %v300 = vpack.c.b16 %v293, %v292
        %v301 = vpack.c.b16 %v295, %v294
        %v302 = vpack.c.b16 %v297, %v296
        %v303 = vpack.c.b16 %v299, %v298
        %vm308 = vcmask 523264
        %v310 = vsel %vm308, %v267, 0
        %v313 = vsel %vm308, %v268, 0
        %315 = vmatprep.subr.bf16.mxu0 0
        %316 = vmatpush1.bf16.msra.mxu0 %v300
        %317 = vmatprep.subr.bf16.mxu0 0
        %318 = vmatpush1.bf16.msra.mxu0 %v301
        %319 = vmatprep.subr.bf16.mxu0 0
        %320 = vmatpush1.bf16.msra.mxu0 %v302
        %321 = vmatprep.subr.bf16.mxu0 0
        %322 = vmatpush1.bf16.msra.mxu0 %v303
        %323 = vmatprep.subr.bf16.mxu0 0
        %324 = vmatpush1.bf16.msra.mxu0 0
        %325 = vmatprep.subr.bf16.mxu0 0
        %326 = vmatpush1.bf16.msra.mxu0 0
        %327 = vmatprep.subr.bf16.mxu0 0
        %328 = vmatpush1.bf16.msra.mxu0 0
        %329 = vmatprep.subr.bf16.mxu0 0
        %330 = vmatpush1.bf16.msra.mxu0 0
        %331 = vmatprep.subr.bf16.mxu0 0
        %332 = vmatpush1.bf16.msra.mxu0 0
        %333 = vmatprep.subr.bf16.mxu0 0
        %334 = vmatpush1.bf16.msra.mxu0 0
        %335 = vmatprep.subr.bf16.mxu0 0
        %336 = vmatpush1.bf16.msra.mxu0 0
        %337 = vmatprep.subr.bf16.mxu0 0
        %338 = vmatpush1.bf16.msra.mxu0 0
        %339 = vmatprep.subr.bf16.mxu0 0
        %340 = vmatpush1.bf16.msra.mxu0 0
        %341 = vmatprep.subr.bf16.mxu0 0
        %342 = vmatpush1.bf16.msra.mxu0 0
        %343 = vmatprep.subr.bf16.mxu0 0
        %344 = vmatpush1.bf16.msra.mxu0 0
        %345 = vmatprep.subr.bf16.mxu0 0
        %346 = vmatpush1.bf16.msra.mxu0 0
        %347 = vmatprep.mubr.bf16.mxu0 0
        %348 = vmatmul.mubr.bf16.gmra.mrb[0].mxu0 %v310
        %v349 = vpop.f32.mrb[0].mxu0
        %v350 = vadd.f32 %v282, %v349
        %v351 = vpop.f32.mrb[0].mxu0
        %v352 = vpop.f32.mrb[0].mxu0
        %v353 = vadd.f32 %v282, %v352
        %v354 = vpop.f32.mrb[0].mxu0
        %355 = vmatprep.mubr.bf16.mxu0 0
        %356 = vmatmul.mubr.bf16.gmra.mrb[0].mxu0 %v313
        %v357 = vpop.f32.mrb[0].mxu0
        %v358 = vadd.f32 %v282, %v357
        %v359 = vpop.f32.mrb[0].mxu0
        %v360 = vpop.f32.mrb[0].mxu0
        %v361 = vadd.f32 %v282, %v360
        %v362 = vpop.f32.mrb[0].mxu0
        %363 = vdwg.mxu0
        %v364 = vxor.u32 %v350, 2147483648
        %v365 = vxor.u32 %v353, 2147483648
        %v366 = vxor.u32 %v358, 2147483648
        %v367 = vxor.u32 %v361, 2147483648
        %v368 = vmul.f32 %v364, 1.442695
        %v369 = vpow.pop %v368
        %v370 = vmul.f32 %v365, 1.442695
        %v371 = vpow.pop %v370
        %v372 = vmul.f32 %v366, 1.442695
        %v373 = vpow.pop %v372
        %v374 = vmul.f32 %v367, 1.442695
        %v375 = vpow.pop %v374
        %v376 = vadd.f32 %v369, 1.0
        %v377 = vadd.f32 %v371, 1.0
        %v378 = vadd.f32 %v373, 1.0
        %v379 = vadd.f32 %v375, 1.0
        %v380 = vrcp.pop %v376
        %v381 = vmul.f32 1.0, %v380
        %v382 = vrcp.pop %v377
        %v383 = vmul.f32 1.0, %v382
        %v384 = vrcp.pop %v378
        %v385 = vmul.f32 1.0, %v384
        %v386 = vrcp.pop %v379
        %v387 = vmul.f32 1.0, %v386
        %v388 = vtanh.pop %v350
        %v389 = vtanh.pop %v353
        %v390 = vtanh.pop %v358
        %v391 = vtanh.pop %v361
        %396 = vrot.lane.b32.xlu0 %v388, 64
        %v397 = vpop.permute.xlu0 %396
        %398 = vrot.lane.b32.xlu0 %v389, 64
        %v399 = vpop.permute.xlu0 %398
        %400 = vrot.lane.b32.xlu0 %v390, 64
        %v401 = vpop.permute.xlu0 %400
        %402 = vrot.lane.b32.xlu0 %v391, 64
        %v403 = vpop.permute.xlu0 %402
        %v408 = vmul.f32 %v381, %v397
        %v409 = vmul.f32 %v383, %v399
        %v410 = vmul.f32 %v385, %v401
        %v411 = vmul.f32 %v387, %v403
        %v412 = vtanh.pop %v408
        %v413 = vtanh.pop %v409
        %v414 = vtanh.pop %v410
        %v415 = vtanh.pop %v411
        %420 = vrot.lane.b32.xlu0 %v412, 32
        %v421 = vpop.permute.xlu0 %420
        %422 = vrot.lane.b32.xlu0 %v413, 32
        %v423 = vpop.permute.xlu0 %422
        %424 = vrot.lane.b32.xlu0 %v414, 32
        %v425 = vpop.permute.xlu0 %424
        %426 = vrot.lane.b32.xlu0 %v415, 32
        %v427 = vpop.permute.xlu0 %426
        %v432 = vmul.f32 %v381, %v421
        %v433 = vmul.f32 %v383, %v423
        %v434 = vmul.f32 %v385, %v425
        %v435 = vmul.f32 %v387, %v427
        %v436 = vld [vmem:[%s3] sm:$0x1]
        %v437 = vld [vmem:[%s3 + $0x1] sm:$0x1]
        %v438 = vlaneseq
        %v439 = vshrl.u32 %v438, 7
        %v440 = vsub.s32 0, %v439
        %v441 = vrot.slane %v436, %v440
        %443 = vrot.lane.b32.xlu0 %v441, 32
        %v444 = vpop.permute.xlu0 %443
        %v446 = vmul.f32 %v432, %v444
        %v447 = vmul.f32 %v433, %v444
        %v448 = vmul.f32 %v434, %v444
        %v449 = vmul.f32 %v435, %v444
        %454 = vrot.lane.b32.xlu0 %v446, 96
        %v455 = vpop.permute.xlu0 %454
        %456 = vrot.lane.b32.xlu0 %v447, 96
        %v457 = vpop.permute.xlu0 %456
        %458 = vrot.lane.b32.xlu0 %v448, 96
        %v459 = vpop.permute.xlu0 %458
        %460 = vrot.lane.b32.xlu0 %v449, 96
        %v461 = vpop.permute.xlu0 %460
        %vm466 = vcmask 261120
        %v467 = vsel %vm466, %v455, 0.0
        %468 = vadd.xlane.f32.xlu0 %v467
        %v469 = vpop.xlane.xlu0 %468
        %v470 = vsel %vm466, %v457, 0.0
        %471 = vadd.xlane.f32.xlu0 %v470
        %v472 = vpop.xlane.xlu0 %471
        %v473 = vsel %vm466, %v459, 0.0
        %474 = vadd.xlane.f32.xlu0 %v473
        %v475 = vpop.xlane.xlu0 %474
        %v476 = vsel %vm466, %v461, 0.0
        %477 = vadd.xlane.f32.xlu0 %v476
        %v478 = vpop.xlane.xlu0 %477
        %v479 = vlaneseq
        %v480 = vshrl.u32 %v479, 7
        %v481 = vsub.s32 0, %v480
        %v482 = vrot.slane %v437, %v481
        %484 = vrot.lane.b32.xlu0 %v482, 32
        %v485 = vpop.permute.xlu0 %484
        %v487 = vmul.f32 %v432, %v485
        %v488 = vmul.f32 %v433, %v485
        %v489 = vmul.f32 %v434, %v485
        %v490 = vmul.f32 %v435, %v485
        %495 = vrot.lane.b32.xlu0 %v487, 96
        %v496 = vpop.permute.xlu0 %495
        %497 = vrot.lane.b32.xlu0 %v488, 96
        %v498 = vpop.permute.xlu0 %497
        %499 = vrot.lane.b32.xlu0 %v489, 96
        %v500 = vpop.permute.xlu0 %499
        %501 = vrot.lane.b32.xlu0 %v490, 96
        %v502 = vpop.permute.xlu0 %501
        %v507 = vsel %vm466, %v496, 0.0
        %508 = vadd.xlane.f32.xlu0 %v507
        %v509 = vpop.xlane.xlu0 %508
        %v510 = vsel %vm466, %v498, 0.0
        %511 = vadd.xlane.f32.xlu0 %v510
        %v512 = vpop.xlane.xlu0 %511
        %v513 = vsel %vm466, %v500, 0.0
        %514 = vadd.xlane.f32.xlu0 %v513
        %v515 = vpop.xlane.xlu0 %514
        %v516 = vsel %vm466, %v502, 0.0
        %517 = vadd.xlane.f32.xlu0 %v516
        %v518 = vpop.xlane.xlu0 %517
        %vm519 = vcmask 7168
        %v520 = vsel %vm519, %v469, %v509
        %v521 = vsel %vm519, %v472, %v512
        %v522 = vsel %vm519, %v475, %v515
        %v523 = vsel %vm519, %v478, %v518
        %v524 = vld [vmem:[%s4] sm:$0x1]
        %v526 = vlaneseq
        %v527 = vshrl.u32 %v526, 7
        %v528 = vsub.s32 0, %v527
        %v529 = vrot.slane %v524, %v528
        %v531 = vadd.f32 %v520, %v529
        %v532 = vadd.f32 %v521, %v529
        %v533 = vadd.f32 %v522, %v529
        %v534 = vadd.f32 %v523, %v529
        %vm535 = vcmask 15360
        %536 = vst.msk [vmem:[%s260] sm:$0xff] %vm535, %v531
        %537 = vst.msk [vmem:[%s260 + $0x8] sm:$0xff] %vm535, %v532
        %538 = vst.msk [vmem:[%s260 + $0x10] sm:$0xff] %vm535, %v533
        %539 = vst.msk [vmem:[%s260 + $0x18] sm:$0xff] %vm535, %v534
        %s540 = smul.u32 4, %s20
        %p541 = scmp.lt.s32.totalorder %s540, 7
        %s542 = scalar_select %p541, %s540, 7
        %s543 = smul.addr %s542, 8
        %s544 = scalar_lea.vmem %s5, %s543
        // Predicated region
        $region49: #{tpu_custom_call.1} parent=39 // pred_check
          %p545 = pneg %p148
        $region50: #{tpu_custom_call.1} parent=39 // pred_check_branch
          %547 = sbr.rel (%p545) target = $region52
        $region51: #{tpu_custom_call.1} parent=39 // pred_region
          %s548 = smul.u32 4, %s20
        $region52: #{tpu_custom_call.1} parent=39 // pred_fallthru
          _
      $region40: #{tpu_custom_call.1} parent=5 // pred_fallthru
        _
      %p549 = scmp.le.s32.totalorder 2, %s15
      // Predicated region
      $region53: #{tpu_custom_call.1} parent=5 // pred_check
        %p550 = pneg %p549
      $region54: #{tpu_custom_call.1} parent=5 // pred_check_branch
        %552 = sbr.rel (%p550) target = $region56
      $region55: #{tpu_custom_call.1} parent=5 // pred_region
        %s553 = ssub.s32 %s15, 2
        // Predicated region
        $region57: #{tpu_custom_call.1} parent=55 // pred_check
          %p554 = pneg %p154
        $region58: #{tpu_custom_call.1} parent=55 // pred_check_branch
          %556 = sbr.rel (%p554) target = $region60
        $region59: #{tpu_custom_call.1} parent=55 // pred_region
          %s557 = smul.u32 4, %s21
          %p558 = scmp.lt.s32.totalorder %s557, 7
          %s559 = scalar_select %p558, %s557, 7
          %s560 = smul.addr %s559, 8
          %s561 = scalar_lea.vmem %s5, %s560
        $region60: #{tpu_custom_call.1} parent=55 // pred_fallthru
          _
      $region56: #{tpu_custom_call.1} parent=5 // pred_fallthru
        _
    $region6: #{tpu_custom_call.1} parent=1 // loop_footer
      %s19 = sadd.s32 1, %s15
    $region7: #{tpu_custom_call.1} parent=1 // loop_footer_branch
      %14 = sbr.rel target = $region3
    $region8: #{tpu_custom_call.1} parent=1 // loop_exit
      _
    %562 = vsyncpa [#allocation3], 1
    %s563 = scalar_lea.sflag [#allocation3], 1
    %564 = vsyncpa %s563, 1
    %565 = vsyncpa [#allocation5], 1

</llo_original>
